<compile_context>
chip_gen: v7x
topology: tpu7x:2x2x1
jax: 0.10.0
libtpu: 0.0.40
codegen_flags: <defaults>
</compile_context>

<pallas_src>
import functools

import jax
import jax.numpy as jnp
from jax import lax
from jax.experimental import pallas as pl
from jax.experimental.pallas import tpu as pltpu


def _dice_partial_kernel(t_ref, l_ref, inter_out_ref, sum_out_ref,
                         inter_acc, sum_acc, *,
                         n_splits, tiles_inner, num_tiles, n_cols, tn, acc_w,
                         col_ragged):
    c = pl.program_id(0)   # core-split index (size 1 unless explicitly split)
    j = pl.program_id(2)   # feature-tile index (innermost reduction axis)

    @pl.when(j == 0)
    def _():
        inter_acc[...] = jnp.zeros_like(inter_acc)
        sum_acc[...] = jnp.zeros_like(sum_acc)

    jg = c * tiles_inner + j          # logical feature-tile id
    n_chunks = tn // acc_w

    def chunk_body(start, masked):
        # One 128-aligned lane chunk: in-kernel f32 cast + 2 VPU ops, then
        # accumulate into the narrow lane-wide accumulators (no cross-lane op).
        t = t_ref[:, pl.ds(start, acc_w)].astype(jnp.float32)
        l = l_ref[:, pl.ds(start, acc_w)].astype(jnp.float32)
        prod = l * t                  # intersection stream
        both = l + t                  # fused denominator stream (sum(l)+sum(t))
        if masked:
            lane = lax.broadcasted_iota(jnp.int32, prod.shape, 1)
            valid = (jg * tn + start + lane) < n_cols
            prod = jnp.where(valid, prod, 0.0)
            both = jnp.where(valid, both, 0.0)
        inter_acc[...] += prod
        sum_acc[...] += both

    def accumulate(masked):
        if n_chunks <= 8:
            for ci in range(n_chunks):            # static unroll
                chunk_body(ci * acc_w, masked)
        else:
            def body(ci, carry):
                chunk_body(pl.multiple_of(ci * acc_w, acc_w), masked)
                return carry
            lax.fori_loop(0, n_chunks, body, None)

    def accumulate_tile():
        if col_ragged:
            # Gate the mask: only the tile straddling n_cols pays for it.
            is_edge = (jg + 1) * tn > n_cols

            @pl.when(jnp.logical_not(is_edge))
            def _():
                accumulate(False)

            @pl.when(is_edge)
            def _():
                accumulate(True)
        else:
            accumulate(False)

    if n_splits * tiles_inner > num_tiles:
        # Uneven core split: overflow steps are skipped (and DMA-free, because
        # the clamped index map repeats the previous block index).
        @pl.when(jg < num_tiles)
        def _():
            accumulate_tile()
    else:
        accumulate_tile()

    @pl.when(j == tiles_inner - 1)
    def _():
        # Single cross-lane (XLU) reduction per (split, row-tile), in the epilogue.
        inter_out_ref[0] = jnp.sum(inter_acc[...], axis=-1, keepdims=True)
        sum_out_ref[0] = jnp.sum(sum_acc[...], axis=-1, keepdims=True)


def _vmem_capacity_bytes():
    try:
        info = pltpu.get_tpu_info()
        cap = getattr(info, "vmem_capacity_bytes", None)
        if cap:
            return int(cap)
    except Exception:
        pass
    return 64 << 20   # conservative fallback (v7x per-core VMEM)


def dice_coefficient(targets, logits, epsilon=0.0001, *,
                     num_splits=1, feature_tile=None,
                     block_byte_budget=8 * 1024 * 1024):
    """Pallas equivalent of the PyTorch dice_coefficient.forward."""
    batch_size = targets.shape[0]
    n = 1
    for d in targets.shape[1:]:
        n *= int(d)

    # Sublane fill for small batches: split each row into S contiguous,
    # sum-neutral pieces (row-major) so rows = B*S >= 8 fills every vreg sublane.
    s = 1
    while batch_size * s < 8 and n % (2 * s) == 0 and n // (2 * s) >= 128:
        s *= 2
    rows = batch_size * s
    n_cols = n // s

    # Zero-copy reshapes; no wrapper pad, no wrapper cast (cast is in-kernel).
    t = jnp.reshape(targets, (rows, n_cols))
    l = jnp.reshape(logits, (rows, n_cols))
    it_t = jnp.dtype(t.dtype).itemsize
    it_l = jnp.dtype(l.dtype).itemsize

    # Row tiling: large batches keep lane-dense blocks / bounded working set.
    if rows <= 1024:
        row_tile, n_row_tiles = rows, 1
    else:
        row_tile = 512
        n_row_tiles = int(pl.cdiv(rows, row_tile))
    padded_rows = row_tile * n_row_tiles

    # Device-aware VMEM budget: ~75% of physical VMEM, capped at 100 MiB
    # (128 MiB chips -> ~96 MiB; v7x 64 MiB -> 48 MiB).
    vmem_limit = min(int(_vmem_capacity_bytes()) * 3 // 4, 100 << 20)
    vmem_limit = max(int(vmem_limit), 32 << 20)

    acc_reserve = 2 * row_tile * 512 * 4        # two narrow f32 accumulators
    headroom = 4 << 20
    usable = max(vmem_limit - acc_reserve - headroom, 4 << 20)

    # Lane tile: multiple of 128, ~block_byte_budget per input, and the
    # double-buffered (2 inputs x 2 buffers) working set must fit `usable`.
    if feature_tile is not None:
        lanes = (int(feature_tile) // 128) * 128
    else:
        lanes_budget = block_byte_budget // (row_tile * max(it_t, it_l))
        lanes_vmem = usable // (2 * row_tile * (it_t + it_l))
        lanes = min(lanes_budget, lanes_vmem) // 128 * 128
    tn = int(max(128, min(lanes, pl.cdiv(n_cols, 128) * 128)))

    # Narrow accumulator width: largest of {512,256,128} dividing tn.
    acc_w = next(w for w in (512, 256, 128) if tn % w == 0)

    num_tiles = int(pl.cdiv(n_cols, tn))
    n_splits = max(1, int(num_splits))
    if num_tiles < 2:
        n_splits = 1
    # TODO(synk): auto-enable num_splits=2 on multi-TensorCore chips (v7x /
    # megacore) once TC count is queryable; CORE_PARALLEL below is what shards
    # the split axis across cores.
    tiles_inner = int(pl.cdiv(num_tiles, n_splits))
    col_ragged = (n_cols % tn) != 0

    def in_map(c, r, j):
        # Clamp keeps every DMA in bounds; overflow steps of an uneven split
        # repeat the previous block index, so Pallas skips the re-fetch.
        return (r, jnp.minimum(c * tiles_inner + j, num_tiles - 1))

    kernel = functools.partial(
        _dice_partial_kernel, n_splits=n_splits, tiles_inner=tiles_inner,
        num_tiles=num_tiles, n_cols=n_cols, tn=tn, acc_w=acc_w,
        col_ragged=col_ragged)

    split_sem = pltpu.CORE_PARALLEL if n_splits > 1 else "arbitrary"

    inter_parts, sum_parts = pl.pallas_call(
        kernel,
        out_shape=(jax.ShapeDtypeStruct((n_splits, padded_rows, 1), jnp.float32),
                   jax.ShapeDtypeStruct((n_splits, padded_rows, 1), jnp.float32)),
        grid_spec=pltpu.PrefetchScalarGridSpec(
            num_scalar_prefetch=0,
            grid=(n_splits, n_row_tiles, tiles_inner),
            in_specs=[
                pl.BlockSpec((row_tile, tn), in_map),
                pl.BlockSpec((row_tile, tn), in_map),
            ],
            out_specs=[
                pl.BlockSpec((1, row_tile, 1), lambda c, r, j: (c, r, 0)),
                pl.BlockSpec((1, row_tile, 1), lambda c, r, j: (c, r, 0)),
            ],
            scratch_shapes=[
                pltpu.VMEM((row_tile, acc_w), jnp.float32),
                pltpu.VMEM((row_tile, acc_w), jnp.float32),
            ],
        ),
        compiler_params=pltpu.CompilerParams(
            dimension_semantics=(split_sem, "arbitrary", "arbitrary"),
            vmem_limit_bytes=int(vmem_limit),
        ),
    )(t, l)

    # Tiny wrapper epilogue: combine per-split partials, drop padded rows,
    # collapse the sublane-fill groups back to per-batch rows, dice + mean.
    inter = jnp.sum(inter_parts[:, :rows, 0], axis=0).reshape(batch_size, s).sum(-1)
    denom = jnp.sum(sum_parts[:, :rows, 0], axis=0).reshape(batch_size, s).sum(-1)
    dice = (2.0 * inter + epsilon) / (denom + epsilon)
    return jnp.mean(dice)


def _reference(targets, logits, epsilon=0.0001):
    b = targets.shape[0]
    t = jnp.reshape(targets, (b, -1)).astype(jnp.float32)
    l = jnp.reshape(logits, (b, -1)).astype(jnp.float32)
    inter = jnp.sum(l * t, axis=-1)
    dice = (2.0 * inter + epsilon) / (jnp.sum(l, -1) + jnp.sum(t, -1) + epsilon)
    return jnp.mean(dice)


if __name__ == "__main__":
    key = jax.random.PRNGKey(0)
    k1, k2 = jax.random.split(key)
    # NCHW inputs, small shapes.
    B, C, H, W = 2, 4, 16, 16
    targets = (jax.random.uniform(k1, (B, C, H, W)) > 0.5).astype(jnp.float32)
    logits = jax.random.uniform(k2, (B, C, H, W), dtype=jnp.float32)

    out = dice_coefficient(targets, logits)
    out = jax.block_until_ready(out)

    ref = _reference(targets, logits)
    assert jnp.allclose(out, ref, atol=1e-5, rtol=1e-5), (out, ref)
    print("KERNEL_OK")
</pallas_src>

<mosaic_0001>
module attributes {stable_mosaic.version = 11 : i64} {
  func.func @_dice_partial_kernel(%arg0: i32, %arg1: i32, %arg2: i32, %arg3: memref<8x256xf32, #tpu.memory_space<vmem>>, %arg4: memref<8x256xf32, #tpu.memory_space<vmem>>, %arg5: memref<1x8x1xf32, #tpu.memory_space<vmem>>, %arg6: memref<1x8x1xf32, #tpu.memory_space<vmem>>, %arg7: memref<8x256xf32, #tpu.memory_space<vmem>>, %arg8: memref<8x256xf32, #tpu.memory_space<vmem>>) attributes {dimension_semantics = [#tpu.dimension_semantics<arbitrary>, #tpu.dimension_semantics<arbitrary>, #tpu.dimension_semantics<arbitrary>], iteration_bounds = array<i64: 1, 1, 1>, scalar_prefetch = 0 : i64, scratch_operands = 2 : i64, tpu.core_type = #tpu.core_type<tc>, window_params = [{transform_indices = @transform_0, window_bounds = array<i64: 8, 256>}, {transform_indices = @transform_1, window_bounds = array<i64: 8, 256>}, {transform_indices = @transform_2, window_bounds = array<i64: 1, 8, 1>}, {transform_indices = @transform_3, window_bounds = array<i64: 1, 8, 1>}]} {
    %c0_i32 = arith.constant 0 : i32
    %0 = arith.cmpi eq, %arg2, %c0_i32 : i32
    %1 = arith.extui %0 : i1 to i32
    %c0_i32_0 = arith.constant 0 : i32
    %2 = arith.cmpi ne, %1, %c0_i32_0 : i32
    scf.if %2 {
      %cst = arith.constant 0.000000e+00 : f32
      %16 = vector.broadcast %cst : f32 to vector<8x256xf32>
      %c0_14 = arith.constant 0 : index
      %c0_15 = arith.constant 0 : index
      %17 = vector.load %arg7[%c0_14, %c0_15] : memref<8x256xf32, #tpu.memory_space<vmem>>, vector<8x256xf32>
      tpu.vector_store %arg7[%c0_14, %c0_15], %16 {strides = array<i32>} : memref<8x256xf32, #tpu.memory_space<vmem>>, vector<8x256xf32>,
      %cst_16 = arith.constant 0.000000e+00 : f32
      %18 = vector.broadcast %cst_16 : f32 to vector<8x256xf32>
      %c0_17 = arith.constant 0 : index
      %c0_18 = arith.constant 0 : index
      %19 = vector.load %arg8[%c0_17, %c0_18] : memref<8x256xf32, #tpu.memory_space<vmem>>, vector<8x256xf32>
      tpu.vector_store %arg8[%c0_17, %c0_18], %18 {strides = array<i32>} : memref<8x256xf32, #tpu.memory_space<vmem>>, vector<8x256xf32>,
    } else {
    }
    %c0 = arith.constant 0 : index
    %c0_1 = arith.constant 0 : index
    %3 = vector.load %arg3[%c0, %c0_1] : memref<8x256xf32, #tpu.memory_space<vmem>>, vector<8x256xf32>
    %c0_2 = arith.constant 0 : index
    %c0_3 = arith.constant 0 : index
    %4 = vector.load %arg4[%c0_2, %c0_3] : memref<8x256xf32, #tpu.memory_space<vmem>>, vector<8x256xf32>
    %5 = arith.mulf %4, %3 : vector<8x256xf32>
    %6 = arith.addf %4, %3 : vector<8x256xf32>
    %c0_4 = arith.constant 0 : index
    %c0_5 = arith.constant 0 : index
    %7 = vector.load %arg7[%c0_4, %c0_5] : memref<8x256xf32, #tpu.memory_space<vmem>>, vector<8x256xf32>
    %8 = arith.addf %7, %5 : vector<8x256xf32>
    %c0_6 = arith.constant 0 : index
    %c0_7 = arith.constant 0 : index
    %9 = vector.load %arg7[%c0_6, %c0_7] : memref<8x256xf32, #tpu.memory_space<vmem>>, vector<8x256xf32>
    tpu.vector_store %arg7[%c0_6, %c0_7], %8 {strides = array<i32>} : memref<8x256xf32, #tpu.memory_space<vmem>>, vector<8x256xf32>,
    %c0_8 = arith.constant 0 : index
    %c0_9 = arith.constant 0 : index
    %10 = vector.load %arg8[%c0_8, %c0_9] : memref<8x256xf32, #tpu.memory_space<vmem>>, vector<8x256xf32>
    %11 = arith.addf %10, %6 : vector<8x256xf32>
    %c0_10 = arith.constant 0 : index
    %c0_11 = arith.constant 0 : index
    %12 = vector.load %arg8[%c0_10, %c0_11] : memref<8x256xf32, #tpu.memory_space<vmem>>, vector<8x256xf32>
    tpu.vector_store %arg8[%c0_10, %c0_11], %11 {strides = array<i32>} : memref<8x256xf32, #tpu.memory_space<vmem>>, vector<8x256xf32>,
    %c0_i32_12 = arith.constant 0 : i32
    %13 = arith.cmpi eq, %arg2, %c0_i32_12 : i32
    %14 = arith.extui %13 : i1 to i32
    %c0_i32_13 = arith.constant 0 : i32
    %15 = arith.cmpi ne, %14, %c0_i32_13 : i32
    scf.if %15 {
      %c0_14 = arith.constant 0 : index
      %c0_15 = arith.constant 0 : index
      %16 = vector.load %arg7[%c0_14, %c0_15] : memref<8x256xf32, #tpu.memory_space<vmem>>, vector<8x256xf32>
      %cst = arith.constant dense<0.000000e+00> : vector<8xf32>
      %17 = vector.multi_reduction <add>, %16, %cst [1] : vector<8x256xf32> to vector<8xf32>
      %18 = vector.shape_cast %17 : vector<8xf32> to vector<8x1xf32>
      %c0_16 = arith.constant 0 : index
      %c0_17 = arith.constant 0 : index
      %c0_18 = arith.constant 0 : index
      %19 = vector.load %arg5[%c0_16, %c0_17, %c0_18] : memref<1x8x1xf32, #tpu.memory_space<vmem>>, vector<1x8x1xf32>
      %20 = vector.shape_cast %19 : vector<1x8x1xf32> to vector<8x1xf32>
      %21 = vector.shape_cast %18 : vector<8x1xf32> to vector<1x8x1xf32>
      tpu.vector_store %arg5[%c0_16, %c0_17, %c0_18], %21 {strides = array<i32>} : memref<1x8x1xf32, #tpu.memory_space<vmem>>, vector<1x8x1xf32>,
      %c0_19 = arith.constant 0 : index
      %c0_20 = arith.constant 0 : index
      %22 = vector.load %arg8[%c0_19, %c0_20] : memref<8x256xf32, #tpu.memory_space<vmem>>, vector<8x256xf32>
      %cst_21 = arith.constant dense<0.000000e+00> : vector<8xf32>
      %23 = vector.multi_reduction <add>, %22, %cst_21 [1] : vector<8x256xf32> to vector<8xf32>
      %24 = vector.shape_cast %23 : vector<8xf32> to vector<8x1xf32>
      %c0_22 = arith.constant 0 : index
      %c0_23 = arith.constant 0 : index
      %c0_24 = arith.constant 0 : index
      %25 = vector.load %arg6[%c0_22, %c0_23, %c0_24] : memref<1x8x1xf32, #tpu.memory_space<vmem>>, vector<1x8x1xf32>
      %26 = vector.shape_cast %25 : vector<1x8x1xf32> to vector<8x1xf32>
      %27 = vector.shape_cast %24 : vector<8x1xf32> to vector<1x8x1xf32>
      tpu.vector_store %arg6[%c0_22, %c0_23, %c0_24], %27 {strides = array<i32>} : memref<1x8x1xf32, #tpu.memory_space<vmem>>, vector<1x8x1xf32>,
    } else {
    }
    return
  }
  func.func @transform_0(%arg0: i32, %arg1: i32, %arg2: i32) -> (i32, i32) {
    %c1_i32 = arith.constant 1 : i32
    %0 = arith.muli %arg0, %c1_i32 : i32
    %1 = arith.addi %0, %arg2 : i32
    %c0_i32 = arith.constant 0 : i32
    %2 = arith.minsi %1, %c0_i32 : i32
    %c0_i32_0 = arith.constant 0 : i32
    return %arg1, %2 : i32, i32
  }
  func.func @transform_1(%arg0: i32, %arg1: i32, %arg2: i32) -> (i32, i32) {
    %c1_i32 = arith.constant 1 : i32
    %0 = arith.muli %arg0, %c1_i32 : i32
    %1 = arith.addi %0, %arg2 : i32
    %c0_i32 = arith.constant 0 : i32
    %2 = arith.minsi %1, %c0_i32 : i32
    %c0_i32_0 = arith.constant 0 : i32
    return %arg1, %2 : i32, i32
  }
  func.func @transform_2(%arg0: i32, %arg1: i32, %arg2: i32) -> (i32, i32, i32) {
    %c0_i32 = arith.constant 0 : i32
    %c0_i32_0 = arith.constant 0 : i32
    return %arg0, %arg1, %c0_i32 : i32, i32, i32
  }
  func.func @transform_3(%arg0: i32, %arg1: i32, %arg2: i32) -> (i32, i32, i32) {
    %c0_i32 = arith.constant 0 : i32
    %c0_i32_0 = arith.constant 0 : i32
    return %arg0, %arg1, %c0_i32 : i32, i32, i32
  }
}

</mosaic_0001>

<llo_original>
// kernel: tpu_custom_call.1
$region0: #{tpu_custom_call.1}
  #allocation0 [shape = 'u32[]', space=smem, size = 0x4, offset = 0x4, fixed_abs, tag = 'smem constant byte address 0x4 - core index']
  #allocation1 [shape = 'u32[144,128]{1,0:T(1,128)}', space=vmem, size = 0x12000, scoped, tag = 'internal scratch']
  #allocation2 [shape = 'f32[8,256]{1,0:T(8,128)}', space=vmem, size = 0x2000, scoped, tag = 'scratch operand']
  #allocation3 [shape = 'f32[8,256]{1,0:T(8,128)}', space=vmem, size = 0x2000, scoped, tag = 'scratch operand']
  %s0 = inlined_call_operand.hbm [shape: f32[8,256], index: 0, kind: input, shape index: {}]
  %s1 = inlined_call_operand.hbm [shape: f32[8,256], index: 1, kind: input, shape index: {}]
  %s2 = inlined_call_operand.vmem [shape: f32[1,8,1], index: 2, kind: output, shape index: {0}]
  %s3 = inlined_call_operand.vmem [shape: f32[1,8,1], index: 3, kind: output, shape index: {1}]
  %4 = xla_tuple %s2, %s3
  %s5 = sld [smem:[#allocation0]]
  $region42: #{tpu_custom_call.1} parent=0
    _
  %s7 = ssub.s32 1, %s5
  %s8 = scalar_select 0, %s7, %s5
  $region1: #{tpu_custom_call.1} parent=0
    #allocation4 [shape = 'u8[8192]{0}', space=vmem, size = 0x2000, scoped, tag = 'input window, operand 0, single buffered']
    #allocation5 [shape = 's32[1]{0}', space=sflag, size = 0x4, scoped, tag = 'scoped memory for tpu_custom_call.1']
    #allocation6 [shape = 'u8[8192]{0}', space=vmem, size = 0x2000, scoped, tag = 'input window, operand 1, single buffered']
    #allocation7 [shape = 's32[1]{0}', space=sflag, size = 0x4, scoped, tag = 'scoped memory for tpu_custom_call.1']
    %9 = vsyncpa [#allocation5], 0
    %10 = vsyncpa [#allocation7], 0
    // Predicated region
    $region2: #{tpu_custom_call.1} parent=1 // pred_check
      _
    $region3: #{tpu_custom_call.1} parent=1 // pred_check_branch
      %12 = sbr.rel (0) target = $region5
    $region4: #{tpu_custom_call.1} parent=1 // pred_region
      %s13 = sadd.s32 0, 0
      %p14 = scmp.lt.s32.totalorder %s13, 0
      %s15 = scalar_select %p14, %s13, 0
      %s16 = smul.u32 2, %s15
      %s18 = ssub.s32 256, 256
      %19 = vsyncadd [#allocation5], %s18
      %s20 = smul.addr %s16, 128
      %s21 = scalar_lea.hbm %s0, %s20
      %s23 = sshll.u32 [#allocation4], 4
      %s24 = int_to_ptr.vmem [resolvable:$true] %s23
      %26 = dma.hbm_to_vmem [thread:$0]  %s21, 256, %s24, [#allocation5]
    $region5: #{tpu_custom_call.1} parent=1 // pred_fallthru
      _
    // Predicated region
    $region6: #{tpu_custom_call.1} parent=1 // pred_check
      _
    $region7: #{tpu_custom_call.1} parent=1 // pred_check_branch
      %28 = sbr.rel (0) target = $region9
    $region8: #{tpu_custom_call.1} parent=1 // pred_region
      %s29 = sadd.s32 0, 0
      %p30 = scmp.lt.s32.totalorder %s29, 0
      %s31 = scalar_select %p30, %s29, 0
      %s32 = smul.u32 2, %s31
      %s34 = ssub.s32 256, 256
      %35 = vsyncadd [#allocation7], %s34
      %s36 = smul.addr %s32, 128
      %s37 = scalar_lea.hbm %s1, %s36
      %s39 = sshll.u32 [#allocation6], 4
      %s40 = int_to_ptr.vmem [resolvable:$true] %s39
      %42 = dma.hbm_to_vmem [thread:$0]  %s37, 256, %s40, [#allocation7]
    $region9: #{tpu_custom_call.1} parent=1 // pred_fallthru
      _
    // Predicated region
    $region10: #{tpu_custom_call.1} parent=1 // pred_check
      _
    $region11: #{tpu_custom_call.1} parent=1 // pred_check_branch
      %44 = sbr.rel (0) target = $region13
    $region12: #{tpu_custom_call.1} parent=1 // pred_region
      %45 = dma.done [#allocation5], 256
    $region13: #{tpu_custom_call.1} parent=1 // pred_fallthru
      _
    // Predicated region
    $region14: #{tpu_custom_call.1} parent=1 // pred_check
      _
    $region15: #{tpu_custom_call.1} parent=1 // pred_check_branch
      %47 = sbr.rel (0) target = $region17
    $region16: #{tpu_custom_call.1} parent=1 // pred_region
      %48 = dma.done [#allocation7], 256
    $region17: #{tpu_custom_call.1} parent=1 // pred_fallthru
      _
    %s49 = sadd.s32 0, 0
    %p50 = scmp.lt.s32.totalorder %s49, 0
    %s51 = scalar_select %p50, %s49, 0
    %s52 = smul.u32 2, %s51
    %s53 = sadd.s32 0, 0
    %p54 = scmp.lt.s32.totalorder %s53, 0
    %s55 = scalar_select %p54, %s53, 0
    %s56 = smul.u32 2, %s55
    %p57 = scmp.eq.s32.totalorder 0, 0
    // Predicated region
    $region18: #{tpu_custom_call.1} parent=1 // pred_check
      %p58 = pneg %p57
    $region19: #{tpu_custom_call.1} parent=1 // pred_check_branch
      %60 = sbr.rel (%p58) target = $region21
    $region20: #{tpu_custom_call.1} parent=1 // pred_region
      %61 = vst [vmem:[#allocation2] sm:$0xff] 0.0
      %62 = vst [vmem:[#allocation2 + $0x8] sm:$0xff] 0.0
      %63 = vst [vmem:[#allocation3] sm:$0xff] 0.0
      %64 = vst [vmem:[#allocation3 + $0x8] sm:$0xff] 0.0
    $region21: #{tpu_custom_call.1} parent=1 // pred_fallthru
      _
    %v65 = vld [vmem:[#allocation4] sm:$0xff]
    %v66 = vld [vmem:[#allocation4 + $0x8] sm:$0xff]
    %v67 = vld [vmem:[#allocation6] sm:$0xff]
    %v68 = vld [vmem:[#allocation6 + $0x8] sm:$0xff]
    %v69 = vmul.f32 %v67, %v65
    %v70 = vmul.f32 %v68, %v66
    %v71 = vadd.f32 %v67, %v65
    %v72 = vadd.f32 %v68, %v66
    %v73 = vld [vmem:[#allocation2] sm:$0xff]
    %v74 = vld [vmem:[#allocation2 + $0x8] sm:$0xff]
    %v75 = vadd.f32 %v73, %v69
    %v76 = vadd.f32 %v74, %v70
    %77 = vst [vmem:[#allocation2] sm:$0xff] %v75
    %78 = vst [vmem:[#allocation2 + $0x8] sm:$0xff] %v76
    %v79 = vld [vmem:[#allocation3] sm:$0xff]
    %v80 = vld [vmem:[#allocation3 + $0x8] sm:$0xff]
    %v81 = vadd.f32 %v79, %v71
    %v82 = vadd.f32 %v80, %v72
    %83 = vst [vmem:[#allocation3] sm:$0xff] %v81
    %84 = vst [vmem:[#allocation3 + $0x8] sm:$0xff] %v82
    // Predicated region
    $region22: #{tpu_custom_call.1} parent=1 // pred_check
      %p85 = pneg %p57
    $region23: #{tpu_custom_call.1} parent=1 // pred_check_branch
      %87 = sbr.rel (%p85) target = $region25
    $region24: #{tpu_custom_call.1} parent=1 // pred_region
      %v88 = vld [vmem:[#allocation2] sm:$0xff]
      %v89 = vld [vmem:[#allocation2 + $0x8] sm:$0xff]
      %v90 = vadd.f32 %v88, %v89
      %91 = vadd.xlane.f32.xlu0 %v90
      %v92 = vpop.xlane.xlu0 %91
      %vm93 = vcmask 7168
      %94 = vst.msk [vmem:[%s2] sm:$0xff] %vm93, %v92
      %v95 = vld [vmem:[#allocation3] sm:$0xff]
      %v96 = vld [vmem:[#allocation3 + $0x8] sm:$0xff]
      %v97 = vadd.f32 %v95, %v96
      %98 = vadd.xlane.f32.xlu0 %v97
      %v99 = vpop.xlane.xlu0 %98
      %100 = vst.msk [vmem:[%s3] sm:$0xff] %vm93, %v99
    $region25: #{tpu_custom_call.1} parent=1 // pred_fallthru
      _
    // Predicated region
    $region26: #{tpu_custom_call.1} parent=1 // pred_check
      _
    $region27: #{tpu_custom_call.1} parent=1 // pred_check_branch
      %102 = sbr.rel (0) target = $region29
    $region28: #{tpu_custom_call.1} parent=1 // pred_region
      _
    $region29: #{tpu_custom_call.1} parent=1 // pred_fallthru
      _
    // Predicated region
    $region30: #{tpu_custom_call.1} parent=1 // pred_check
      _
    $region31: #{tpu_custom_call.1} parent=1 // pred_check_branch
      %104 = sbr.rel (0) target = $region33
    $region32: #{tpu_custom_call.1} parent=1 // pred_region
      _
    $region33: #{tpu_custom_call.1} parent=1 // pred_fallthru
      _
    // Predicated region
    $region34: #{tpu_custom_call.1} parent=1 // pred_check
      _
    $region35: #{tpu_custom_call.1} parent=1 // pred_check_branch
      %106 = sbr.rel (0) target = $region37
    $region36: #{tpu_custom_call.1} parent=1 // pred_region
      _
    $region37: #{tpu_custom_call.1} parent=1 // pred_fallthru
      _
    // Predicated region
    $region38: #{tpu_custom_call.1} parent=1 // pred_check
      _
    $region39: #{tpu_custom_call.1} parent=1 // pred_check_branch
      %108 = sbr.rel (0) target = $region41
    $region40: #{tpu_custom_call.1} parent=1 // pred_region
      _
    $region41: #{tpu_custom_call.1} parent=1 // pred_fallthru
      _
    %109 = vsyncpa [#allocation5], 1
    %110 = vsyncpa [#allocation7], 1

</llo_original>
